<compile_context>
chip_gen: v7x
topology: tpu7x:2x2x1
jax: 0.10.0
libtpu: 0.0.40
codegen_flags: <defaults>
</compile_context>

<pallas_src>
import functools

import numpy as np

import jax
import jax.numpy as jnp
from jax import lax
from jax.experimental import pallas as pl
from jax.experimental.pallas import tpu as pltpu

BN_EPS = 1e-5
LANE = 128
VMEM_LIMIT = 48 * 1024 * 1024        # fits v7x 64 MiB physical; > scoped defaults
VMEM_TILE_BUDGET = 40 * 1024 * 1024  # headroom under VMEM_LIMIT for tile sizing


# ---------------------------------------------------------------------------
# Pass 1 (stats only): conv1 (k=1) as (M, Cin) @ (Cin, Cp); emit per-tile BN1
# partial sums.  h1 is NOT written to HBM -- it is recomputed in pass 2.
# ---------------------------------------------------------------------------
def conv1_stats_kernel(x_ref, w1_ref, stats_ref):
    nb, L, cin = x_ref.shape
    x = x_ref[...].reshape(nb * L, cin).astype(w1_ref.dtype)
    h = jnp.dot(x, w1_ref[...], preferred_element_type=jnp.float32)
    s = jnp.sum(h, axis=0, keepdims=True)            # (1, Cp), f32 accumulator
    ss = jnp.sum(h * h, axis=0, keepdims=True)
    stats_ref[...] = jnp.concatenate([s, ss], axis=0)[None]


# ---------------------------------------------------------------------------
# Pass 2: recompute conv1, folded BN1 + ReLU (f32 VPU), conv2 (k=3, pad=1) as
# three accumulating MXU dots, write y2 (compute_dtype) + per-tile BN2 stats.
# ---------------------------------------------------------------------------
def conv2_stats_kernel(x_ref, w1_ref, s1_ref, t1_ref, w2_ref, mask_ref,
                       y_ref, stats_ref):
    nb, L, cin = x_ref.shape
    m = nb * L
    cdt = w1_ref.dtype

    x = x_ref[...].reshape(m, cin).astype(cdt)
    h = jnp.dot(x, w1_ref[...], preferred_element_type=jnp.float32)
    h = jnp.maximum(h * s1_ref[...] + t1_ref[...], 0.0)        # BN1 + ReLU, f32

    # Shifted copies via XLU roll + precomputed boundary masks (zero pad at
    # l=0 / l=L-1, no bleed across the samples packed in this tile).
    mask = mask_ref[...]                                        # (m, 2) f32
    h_prev = (pltpu.roll(h, shift=1, axis=0) * mask[:, 0:1]).astype(cdt)
    h_next = (pltpu.roll(h, shift=m - 1, axis=0) * mask[:, 1:2]).astype(cdt)
    hb = h.astype(cdt)

    # Three accumulating dots -- no (M, 3C) lane-concat buffer in VMEM.
    y = jnp.dot(hb, w2_ref[1], preferred_element_type=jnp.float32)
    y += jnp.dot(h_prev, w2_ref[0], preferred_element_type=jnp.float32)
    y += jnp.dot(h_next, w2_ref[2], preferred_element_type=jnp.float32)

    y_ref[...] = y.astype(y_ref.dtype).reshape(nb, L, -1)
    s = jnp.sum(y, axis=0, keepdims=True)                       # from f32 acc
    ss = jnp.sum(y * y, axis=0, keepdims=True)
    stats_ref[...] = jnp.concatenate([s, ss], axis=0)[None]


# ---------------------------------------------------------------------------
# Pass 3: folded BN2 + ReLU, written in place over y2 (input_output_aliases).
# ---------------------------------------------------------------------------
def bn_relu_kernel(y_ref, s_ref, t_ref, o_ref):
    nb, L, c = y_ref.shape
    y = y_ref[...].reshape(nb * L, c).astype(jnp.float32)
    o = jnp.maximum(y * s_ref[...] + t_ref[...], 0.0)
    o_ref[...] = o.astype(o_ref.dtype).reshape(nb, L, c)


def _fold_bn(partial_stats, gamma, beta, count):
    """(G, 2, Cp) per-tile sums -> folded (scale, shift), each (1, Cp), f32."""
    tot = jnp.sum(partial_stats, axis=0)                        # (2, Cp)
    mean = tot[0] / count
    # clamp: E[x^2]-E[x]^2 can go slightly negative under f32 cancellation
    var = jnp.maximum(tot[1] / count - mean * mean, 0.0)
    scale = gamma * lax.rsqrt(var + BN_EPS)
    shift = beta - mean * scale
    return scale.reshape(1, -1), shift.reshape(1, -1)


def _pick_batch_tile(N, L, c_in, c_pad, store_bytes):
    """Largest batch tile targeting >=512 flattened rows per grid step while
    double-buffered in/out blocks + f32 temporaries fit the VMEM budget, and
    without collapsing the grid below ~2 steps (v7x megacore) too eagerly."""
    row_bytes = 2 * (c_in * 4 + c_pad * store_bytes) + 6 * c_pad * 4
    cap_rows = max(L, VMEM_TILE_BUDGET // row_bytes)
    nb = 1
    for d in range(1, N + 1):
        if N % d:
            continue
        rows = d * L
        if rows > cap_rows:
            break
        if rows >= 512:
            nb = d
            break
        if N // d <= 2 and rows >= 256:
            break            # keep some grid steps once tiles are big enough
        nb = d
    return nb


def basic_conv_forward(x_nlc, params, *, batch_tile=None, out_channels=None):
    """BasicConv forward.  x_nlc: (N, L, Cin) f32, channel-last.

    `params` comes from `prepare_params` (lane-padded, per-tap-split weights,
    conv biases folded away).  Returns (N, L, out_channels or Cp) in the
    params' compute dtype.  Keep the surrounding graph channel-last; production
    consumers should also keep the lane-padded Cp channels rather than slicing.
    """
    w1, w2, g1, be1, g2, be2 = params
    N, L, Cin = x_nlc.shape
    Cp = w1.shape[1]
    cdt = w1.dtype                         # matmul-operand / storage dtype
    store_bytes = jnp.dtype(cdt).itemsize

    nb = batch_tile if (batch_tile and N % batch_tile == 0) \
        else _pick_batch_tile(N, L, Cin, Cp, store_bytes)
    G = N // nb
    M = nb * L

    # Boundary masks for the k=3 taps, built once (not iota+select per step).
    lpos = np.arange(M) % L
    edge_mask = jnp.asarray(
        np.stack([lpos != 0, lpos != L - 1], axis=1).astype(np.float32))

    cparams = pltpu.CompilerParams(
        dimension_semantics=("parallel",),        # v7x: both TCs split the grid
        vmem_limit_bytes=VMEM_LIMIT)

    x_spec = pl.BlockSpec((nb, L, Cin), lambda i: (i, 0, 0))
    act_spec = pl.BlockSpec((nb, L, Cp), lambda i: (i, 0, 0))
    vec_spec = pl.BlockSpec((1, Cp), lambda i: (0, 0))
    w1_spec = pl.BlockSpec(w1.shape, lambda i: (0, 0))
    w2_spec = pl.BlockSpec(w2.shape, lambda i: (0, 0, 0))
    mask_spec = pl.BlockSpec(edge_mask.shape, lambda i: (0, 0))
    stats_spec = pl.BlockSpec((1, 2, Cp), lambda i: (i, 0, 0))
    # TODO(synk): pipeline_mode=pl.Buffered(1) on the constant-index specs
    #             (w1/w2/scales/mask) to drop their dead second buffer.

    stats_shape = jax.ShapeDtypeStruct((G, 2, Cp), jnp.float32)
    act_shape = jax.ShapeDtypeStruct((N, L, Cp), cdt)

    # ---- pass 1: BN1 partial stats only (no h1 round-trip through HBM) -----
    st1 = pl.pallas_call(
        conv1_stats_kernel,
        grid=(G,),
        in_specs=[x_spec, w1_spec],
        out_specs=stats_spec,
        out_shape=stats_shape,
        compiler_params=cparams,
    )(x_nlc, w1)
    s1, t1 = _fold_bn(st1, g1, be1, N * L)

    # ---- pass 2: recompute conv1, BN1+ReLU, 3-tap conv2, BN2 partials ------
    y2, st2 = pl.pallas_call(
        conv2_stats_kernel,
        grid=(G,),
        in_specs=[x_spec, w1_spec, vec_spec, vec_spec, w2_spec, mask_spec],
        out_specs=(act_spec, stats_spec),
        out_shape=(act_shape, stats_shape),
        compiler_params=cparams,
    )(x_nlc, w1, s1, t1, w2, edge_mask)
    s2, t2 = _fold_bn(st2, g2, be2, N * L)

    # ---- pass 3: BN2 + ReLU, in place over y2 -------------------------------
    out = pl.pallas_call(
        bn_relu_kernel,
        grid=(G,),
        in_specs=[act_spec, vec_spec, vec_spec],
        out_specs=act_spec,
        out_shape=act_shape,
        input_output_aliases={0: 0},
        compiler_params=cparams,
    )(y2, s2, t2)

    if out_channels is not None and out_channels < Cp:
        out = out[..., :out_channels]   # demo convenience; keep padded in prod
    return out


def prepare_params(torch_params, *, compute_dtype=jnp.bfloat16, lane_multiple=LANE):
    """PyTorch-shaped tensors -> kernel params.

    Conv biases are intentionally dropped: training-mode BN's mean subtraction
    cancels a per-channel bias exactly.  (Eval-mode / running-stats BN would
    NOT cancel it -- this forward is the training-mode batch-stats path only.)

      w1 : (Cin, Cp)    from conv1.weight (Cout, Cin, 1); lane-padded, compute_dtype
      w2 : (3, Cp, Cp)  from conv2.weight (Cout, Cout, 3); taps ordered l-1, l, l+1
      g1, be1, g2, be2 : (Cp,) f32; padded channels get gamma=0 (stay exactly 0)
    """
    w1_t, _b1_t, w2_t, _b2_t, g1, be1, g2, be2 = torch_params
    c_out, c_in, _ = w1_t.shape
    c_pad = ((c_out + lane_multiple - 1) // lane_multiple) * lane_multiple

    w1 = jnp.zeros((c_in, c_pad), jnp.float32).at[:, :c_out].set(
        jnp.transpose(w1_t[:, :, 0], (1, 0)))
    w2 = jnp.zeros((3, c_pad, c_pad), jnp.float32).at[:, :c_out, :c_out].set(
        jnp.transpose(w2_t, (2, 1, 0)))
    pad_vec = lambda v: jnp.zeros((c_pad,), jnp.float32).at[:c_out].set(v)
    return (w1.astype(compute_dtype), w2.astype(compute_dtype),
            pad_vec(g1), pad_vec(be1), pad_vec(g2), pad_vec(be2))


def make_torch_params(key, in_planes, out_planes):
    """Deterministic PyTorch-shaped parameters (incl. conv biases)."""
    ks = jax.random.split(key, 8)
    w1_t = jax.random.normal(ks[0], (out_planes, in_planes, 1), jnp.float32) * 0.1
    b1_t = jax.random.normal(ks[1], (out_planes,), jnp.float32) * 0.1
    w2_t = jax.random.normal(ks[2], (out_planes, out_planes, 3), jnp.float32) * 0.1
    b2_t = jax.random.normal(ks[3], (out_planes,), jnp.float32) * 0.1
    g1 = 1.0 + 0.1 * jax.random.normal(ks[4], (out_planes,), jnp.float32)
    be1 = 0.1 * jax.random.normal(ks[5], (out_planes,), jnp.float32)
    g2 = 1.0 + 0.1 * jax.random.normal(ks[6], (out_planes,), jnp.float32)
    be2 = 0.1 * jax.random.normal(ks[7], (out_planes,), jnp.float32)
    return (w1_t, b1_t, w2_t, b2_t, g1, be1, g2, be2)


def reference_forward(x_ncl, torch_params):
    """Pure-JAX replica of the PyTorch forward (NCL layout, training-mode BN)."""
    w1_t, b1_t, w2_t, b2_t, g1, be1, g2, be2 = torch_params

    def conv1d(x, w, b, pad):
        y = lax.conv_general_dilated(
            x, w, window_strides=(1,), padding=[(pad, pad)],
            dimension_numbers=('NCH', 'OIH', 'NCH'))
        return y + b[None, :, None]

    def bn(x, g, b):
        m = jnp.mean(x, axis=(0, 2), keepdims=True)
        v = jnp.mean((x - m) ** 2, axis=(0, 2), keepdims=True)
        return (x - m) * lax.rsqrt(v + BN_EPS) * g[None, :, None] + b[None, :, None]

    h = jnp.maximum(bn(conv1d(x_ncl, w1_t, b1_t, 0), g1, be1), 0.0)
    y = jnp.maximum(bn(conv1d(h, w2_t, b2_t, 1), g2, be2), 0.0)
    return y


if __name__ == "__main__":
    key = jax.random.PRNGKey(0)
    kx, kp = jax.random.split(key)

    N, Cin, Cout, L = 2, 4, 8, 16
    x_nlc = jax.random.normal(kx, (N, L, Cin), jnp.float32)   # channel-last
    torch_params = make_torch_params(kp, Cin, Cout)

    # Faithful PyTorch-layout (NCL) reference: conv biases + two-pass batch BN.
    x_ncl = jnp.transpose(x_nlc, (0, 2, 1))
    y_ref = jnp.transpose(reference_forward(x_ncl, torch_params), (0, 2, 1))

    fwd = jax.jit(functools.partial(basic_conv_forward, out_channels=Cout))

    # f32 path: tight check against the reference.
    y32 = jax.block_until_ready(
        fwd(x_nlc, prepare_params(torch_params, compute_dtype=jnp.float32)))
    assert y32.shape == (N, L, Cout)
    err32 = float(jnp.max(jnp.abs(y32.astype(jnp.float32) - y_ref)))
    assert err32 < 1e-4, f"f32 path mismatch vs reference: max abs err = {err32}"

    # bf16 path (production config: bf16 MXU operands + bf16 intermediates),
    # BN stats still accumulated in f32 inside the kernels.
    ybf = jax.block_until_ready(
        fwd(x_nlc, prepare_params(torch_params, compute_dtype=jnp.bfloat16)))
    assert ybf.shape == (N, L, Cout)
    errbf = float(jnp.max(jnp.abs(ybf.astype(jnp.float32) - y_ref)))
    assert errbf < 1e-1, f"bf16 path mismatch vs reference: max abs err = {errbf}"

    print("KERNEL_OK")
</pallas_src>

<mosaic_0001>
module attributes {stable_mosaic.version = 11 : i64} {
  func.func @conv1_stats_kernel(%arg0: i32, %arg1: memref<2x16x4xf32, #tpu.memory_space<vmem>>, %arg2: memref<4x128xf32, #tpu.memory_space<vmem>>, %arg3: memref<1x2x128xf32, #tpu.memory_space<vmem>>) attributes {dimension_semantics = [#tpu.dimension_semantics<parallel>], iteration_bounds = array<i64: 1>, scalar_prefetch = 0 : i64, scratch_operands = 0 : i64, tpu.core_type = #tpu.core_type<tc>, window_params = [{transform_indices = @transform_0, window_bounds = array<i64: 2, 16, 4>}, {pipeline_mode = #tpu.pipeline_mode<synchronous>, transform_indices = @transform_1, window_bounds = array<i64: 4, 128>}, {transform_indices = @transform_2, window_bounds = array<i64: 1, 2, 128>}]} {
    %c0 = arith.constant 0 : index
    %c0_0 = arith.constant 0 : index
    %c0_1 = arith.constant 0 : index
    %0 = vector.load %arg1[%c0, %c0_0, %c0_1] : memref<2x16x4xf32, #tpu.memory_space<vmem>>, vector<2x16x4xf32>
    %1 = vector.shape_cast %0 : vector<2x16x4xf32> to vector<32x4xf32>
    %c0_2 = arith.constant 0 : index
    %c0_3 = arith.constant 0 : index
    %2 = vector.load %arg2[%c0_2, %c0_3] : memref<4x128xf32, #tpu.memory_space<vmem>>, vector<4x128xf32>
    %cst = arith.constant dense<0.000000e+00> : vector<32x128xf32>
    %3 = tpu.matmul %1, %2, %cst {dimension_numbers = #tpu.dot_dimension_numbers<[1], [0], [0], [1], [0, 0, 1, 1], [], []>} : vector<32x4xf32>, vector<4x128xf32>, vector<32x128xf32> -> vector<32x128xf32>
    %cst_4 = arith.constant dense<0.000000e+00> : vector<128xf32>
    %4 = vector.multi_reduction <add>, %3, %cst_4 [0] : vector<32x128xf32> to vector<128xf32>
    %5 = vector.shape_cast %4 : vector<128xf32> to vector<1x128xf32>
    %6 = arith.mulf %3, %3 : vector<32x128xf32>
    %cst_5 = arith.constant dense<0.000000e+00> : vector<128xf32>
    %7 = vector.multi_reduction <add>, %6, %cst_5 [0] : vector<32x128xf32> to vector<128xf32>
    %8 = vector.shape_cast %7 : vector<128xf32> to vector<1x128xf32>
    %9 = tpu.concatenate %5, %8 in 0 : vector<1x128xf32>, vector<1x128xf32> -> vector<2x128xf32>
    %10 = vector.shape_cast %9 : vector<2x128xf32> to vector<1x2x128xf32>
    %c0_6 = arith.constant 0 : index
    %c0_7 = arith.constant 0 : index
    %c0_8 = arith.constant 0 : index
    %11 = vector.load %arg3[%c0_6, %c0_7, %c0_8] : memref<1x2x128xf32, #tpu.memory_space<vmem>>, vector<1x2x128xf32>
    tpu.vector_store %arg3[%c0_6, %c0_7, %c0_8], %10 {strides = array<i32>} : memref<1x2x128xf32, #tpu.memory_space<vmem>>, vector<1x2x128xf32>,
    return
  }
  func.func @transform_0(%arg0: i32) -> (i32, i32, i32) {
    %c0_i32 = arith.constant 0 : i32
    %c0_i32_0 = arith.constant 0 : i32
    %c0_i32_1 = arith.constant 0 : i32
    return %arg0, %c0_i32, %c0_i32_0 : i32, i32, i32
  }
  func.func @transform_1(%arg0: i32) -> (i32, i32) {
    %c0_i32 = arith.constant 0 : i32
    %c0_i32_0 = arith.constant 0 : i32
    %c0_i32_1 = arith.constant 0 : i32
    return %c0_i32, %c0_i32_0 : i32, i32
  }
  func.func @transform_2(%arg0: i32) -> (i32, i32, i32) {
    %c0_i32 = arith.constant 0 : i32
    %c0_i32_0 = arith.constant 0 : i32
    %c0_i32_1 = arith.constant 0 : i32
    return %arg0, %c0_i32, %c0_i32_0 : i32, i32, i32
  }
}

module attributes {stable_mosaic.version = 11 : i64} {
  func.func @conv2_stats_kernel(%arg0: i32, %arg1: memref<2x16x4xf32, #tpu.memory_space<vmem>>, %arg2: memref<4x128xf32, #tpu.memory_space<vmem>>, %arg3: memref<1x128xf32, #tpu.memory_space<vmem>>, %arg4: memref<1x128xf32, #tpu.memory_space<vmem>>, %arg5: memref<3x128x128xf32, #tpu.memory_space<vmem>>, %arg6: memref<32x2xf32, #tpu.memory_space<vmem>>, %arg7: memref<2x16x128xf32, #tpu.memory_space<vmem>>, %arg8: memref<1x2x128xf32, #tpu.memory_space<vmem>>) attributes {dimension_semantics = [#tpu.dimension_semantics<parallel>], iteration_bounds = array<i64: 1>, scalar_prefetch = 0 : i64, scratch_operands = 0 : i64, tpu.core_type = #tpu.core_type<tc>, window_params = [{transform_indices = @transform_0, window_bounds = array<i64: 2, 16, 4>}, {pipeline_mode = #tpu.pipeline_mode<synchronous>, transform_indices = @transform_1, window_bounds = array<i64: 4, 128>}, {pipeline_mode = #tpu.pipeline_mode<synchronous>, transform_indices = @transform_2, window_bounds = array<i64: 1, 128>}, {pipeline_mode = #tpu.pipeline_mode<synchronous>, transform_indices = @transform_3, window_bounds = array<i64: 1, 128>}, {pipeline_mode = #tpu.pipeline_mode<synchronous>, transform_indices = @transform_4, window_bounds = array<i64: 3, 128, 128>}, {pipeline_mode = #tpu.pipeline_mode<synchronous>, transform_indices = @transform_5, window_bounds = array<i64: 32, 2>}, {transform_indices = @transform_6, window_bounds = array<i64: 2, 16, 128>}, {transform_indices = @transform_7, window_bounds = array<i64: 1, 2, 128>}]} {
    %c0 = arith.constant 0 : index
    %c0_0 = arith.constant 0 : index
    %c0_1 = arith.constant 0 : index
    %0 = vector.load %arg1[%c0, %c0_0, %c0_1] : memref<2x16x4xf32, #tpu.memory_space<vmem>>, vector<2x16x4xf32>
    %1 = vector.shape_cast %0 : vector<2x16x4xf32> to vector<32x4xf32>
    %c0_2 = arith.constant 0 : index
    %c0_3 = arith.constant 0 : index
    %2 = vector.load %arg2[%c0_2, %c0_3] : memref<4x128xf32, #tpu.memory_space<vmem>>, vector<4x128xf32>
    %cst = arith.constant dense<0.000000e+00> : vector<32x128xf32>
    %3 = tpu.matmul %1, %2, %cst {dimension_numbers = #tpu.dot_dimension_numbers<[1], [0], [0], [1], [0, 0, 1, 1], [], []>} : vector<32x4xf32>, vector<4x128xf32>, vector<32x128xf32> -> vector<32x128xf32>
    %c0_4 = arith.constant 0 : index
    %c0_5 = arith.constant 0 : index
    %4 = vector.load %arg3[%c0_4, %c0_5] : memref<1x128xf32, #tpu.memory_space<vmem>>, vector<1x128xf32>
    %5 = vector.broadcast %4 : vector<1x128xf32> to vector<32x128xf32>
    %6 = arith.mulf %3, %5 : vector<32x128xf32>
    %c0_6 = arith.constant 0 : index
    %c0_7 = arith.constant 0 : index
    %7 = vector.load %arg4[%c0_6, %c0_7] : memref<1x128xf32, #tpu.memory_space<vmem>>, vector<1x128xf32>
    %8 = vector.broadcast %7 : vector<1x128xf32> to vector<32x128xf32>
    %9 = arith.addf %6, %8 : vector<32x128xf32>
    %cst_8 = arith.constant 0.000000e+00 : f32
    %10 = vector.broadcast %cst_8 : f32 to vector<32x128xf32>
    %11 = arith.maximumf %9, %10 : vector<32x128xf32>
    %c0_9 = arith.constant 0 : index
    %c0_10 = arith.constant 0 : index
    %12 = vector.load %arg6[%c0_9, %c0_10] : memref<32x2xf32, #tpu.memory_space<vmem>>, vector<32x2xf32>
    %c1_i32 = arith.constant 1 : i32
    %13 = tpu.dynamic_rotate %11 by %c1_i32 dim 0 : vector<32x128xf32>, i32 -> vector<32x128xf32>
    %14 = vector.extract_strided_slice %12 {offsets = [0, 0], sizes = [32, 1], strides = [1, 1]} : vector<32x2xf32> to vector<32x1xf32>
    %15 = vector.broadcast %14 : vector<32x1xf32> to vector<32x128xf32>
    %16 = arith.mulf %13, %15 : vector<32x128xf32>
    %c31_i32 = arith.constant 31 : i32
    %17 = tpu.dynamic_rotate %11 by %c31_i32 dim 0 : vector<32x128xf32>, i32 -> vector<32x128xf32>
    %18 = vector.extract_strided_slice %12 {offsets = [0, 1], sizes = [32, 1], strides = [1, 1]} : vector<32x2xf32> to vector<32x1xf32>
    %19 = vector.broadcast %18 : vector<32x1xf32> to vector<32x128xf32>
    %20 = arith.mulf %17, %19 : vector<32x128xf32>
    %c1 = arith.constant 1 : index
    %c0_11 = arith.constant 0 : index
    %c0_12 = arith.constant 0 : index
    %21 = vector.load %arg5[%c1, %c0_11, %c0_12] : memref<3x128x128xf32, #tpu.memory_space<vmem>>, vector<1x128x128xf32>
    %22 = vector.shape_cast %21 : vector<1x128x128xf32> to vector<128x128xf32>
    %cst_13 = arith.constant dense<0.000000e+00> : vector<32x128xf32>
    %23 = tpu.matmul %11, %22, %cst_13 {dimension_numbers = #tpu.dot_dimension_numbers<[1], [0], [0], [1], [0, 0, 1, 1], [], []>} : vector<32x128xf32>, vector<128x128xf32>, vector<32x128xf32> -> vector<32x128xf32>
    %c0_14 = arith.constant 0 : index
    %c0_15 = arith.constant 0 : index
    %c0_16 = arith.constant 0 : index
    %24 = vector.load %arg5[%c0_14, %c0_15, %c0_16] : memref<3x128x128xf32, #tpu.memory_space<vmem>>, vector<1x128x128xf32>
    %25 = vector.shape_cast %24 : vector<1x128x128xf32> to vector<128x128xf32>
    %cst_17 = arith.constant dense<0.000000e+00> : vector<32x128xf32>
    %26 = tpu.matmul %16, %25, %cst_17 {dimension_numbers = #tpu.dot_dimension_numbers<[1], [0], [0], [1], [0, 0, 1, 1], [], []>} : vector<32x128xf32>, vector<128x128xf32>, vector<32x128xf32> -> vector<32x128xf32>
    %27 = arith.addf %23, %26 : vector<32x128xf32>
    %c2 = arith.constant 2 : index
    %c0_18 = arith.constant 0 : index
    %c0_19 = arith.constant 0 : index
    %28 = vector.load %arg5[%c2, %c0_18, %c0_19] : memref<3x128x128xf32, #tpu.memory_space<vmem>>, vector<1x128x128xf32>
    %29 = vector.shape_cast %28 : vector<1x128x128xf32> to vector<128x128xf32>
    %cst_20 = arith.constant dense<0.000000e+00> : vector<32x128xf32>
    %30 = tpu.matmul %20, %29, %cst_20 {dimension_numbers = #tpu.dot_dimension_numbers<[1], [0], [0], [1], [0, 0, 1, 1], [], []>} : vector<32x128xf32>, vector<128x128xf32>, vector<32x128xf32> -> vector<32x128xf32>
    %31 = arith.addf %27, %30 : vector<32x128xf32>
    %32 = vector.shape_cast %31 : vector<32x128xf32> to vector<2x16x128xf32>
    %c0_21 = arith.constant 0 : index
    %c0_22 = arith.constant 0 : index
    %c0_23 = arith.constant 0 : index
    %33 = vector.load %arg7[%c0_21, %c0_22, %c0_23] : memref<2x16x128xf32, #tpu.memory_space<vmem>>, vector<2x16x128xf32>
    tpu.vector_store %arg7[%c0_21, %c0_22, %c0_23], %32 {strides = array<i32>} : memref<2x16x128xf32, #tpu.memory_space<vmem>>, vector<2x16x128xf32>,
    %cst_24 = arith.constant dense<0.000000e+00> : vector<128xf32>
    %34 = vector.multi_reduction <add>, %31, %cst_24 [0] : vector<32x128xf32> to vector<128xf32>
    %35 = vector.shape_cast %34 : vector<128xf32> to vector<1x128xf32>
    %36 = arith.mulf %31, %31 : vector<32x128xf32>
    %cst_25 = arith.constant dense<0.000000e+00> : vector<128xf32>
    %37 = vector.multi_reduction <add>, %36, %cst_25 [0] : vector<32x128xf32> to vector<128xf32>
    %38 = vector.shape_cast %37 : vector<128xf32> to vector<1x128xf32>
    %39 = tpu.concatenate %35, %38 in 0 : vector<1x128xf32>, vector<1x128xf32> -> vector<2x128xf32>
    %40 = vector.shape_cast %39 : vector<2x128xf32> to vector<1x2x128xf32>
    %c0_26 = arith.constant 0 : index
    %c0_27 = arith.constant 0 : index
    %c0_28 = arith.constant 0 : index
    %41 = vector.load %arg8[%c0_26, %c0_27, %c0_28] : memref<1x2x128xf32, #tpu.memory_space<vmem>>, vector<1x2x128xf32>
    tpu.vector_store %arg8[%c0_26, %c0_27, %c0_28], %40 {strides = array<i32>} : memref<1x2x128xf32, #tpu.memory_space<vmem>>, vector<1x2x128xf32>,
    return
  }
  func.func @transform_0(%arg0: i32) -> (i32, i32, i32) {
    %c0_i32 = arith.constant 0 : i32
    %c0_i32_0 = arith.constant 0 : i32
    %c0_i32_1 = arith.constant 0 : i32
    return %arg0, %c0_i32, %c0_i32_0 : i32, i32, i32
  }
  func.func @transform_1(%arg0: i32) -> (i32, i32) {
    %c0_i32 = arith.constant 0 : i32
    %c0_i32_0 = arith.constant 0 : i32
    %c0_i32_1 = arith.constant 0 : i32
    return %c0_i32, %c0_i32_0 : i32, i32
  }
  func.func @transform_2(%arg0: i32) -> (i32, i32) {
    %c0_i32 = arith.constant 0 : i32
    %c0_i32_0 = arith.constant 0 : i32
    %c0_i32_1 = arith.constant 0 : i32
    return %c0_i32, %c0_i32_0 : i32, i32
  }
  func.func @transform_3(%arg0: i32) -> (i32, i32) {
    %c0_i32 = arith.constant 0 : i32
    %c0_i32_0 = arith.constant 0 : i32
    %c0_i32_1 = arith.constant 0 : i32
    return %c0_i32, %c0_i32_0 : i32, i32
  }
  func.func @transform_4(%arg0: i32) -> (i32, i32, i32) {
    %c0_i32 = arith.constant 0 : i32
    %c0_i32_0 = arith.constant 0 : i32
    %c0_i32_1 = arith.constant 0 : i32
    %c0_i32_2 = arith.constant 0 : i32
    return %c0_i32, %c0_i32_0, %c0_i32_1 : i32, i32, i32
  }
  func.func @transform_5(%arg0: i32) -> (i32, i32) {
    %c0_i32 = arith.constant 0 : i32
    %c0_i32_0 = arith.constant 0 : i32
    %c0_i32_1 = arith.constant 0 : i32
    return %c0_i32, %c0_i32_0 : i32, i32
  }
  func.func @transform_6(%arg0: i32) -> (i32, i32, i32) {
    %c0_i32 = arith.constant 0 : i32
    %c0_i32_0 = arith.constant 0 : i32
    %c0_i32_1 = arith.constant 0 : i32
    return %arg0, %c0_i32, %c0_i32_0 : i32, i32, i32
  }
  func.func @transform_7(%arg0: i32) -> (i32, i32, i32) {
    %c0_i32 = arith.constant 0 : i32
    %c0_i32_0 = arith.constant 0 : i32
    %c0_i32_1 = arith.constant 0 : i32
    return %arg0, %c0_i32, %c0_i32_0 : i32, i32, i32
  }
}

module attributes {stable_mosaic.version = 11 : i64} {
  func.func @bn_relu_kernel(%arg0: i32, %arg1: memref<2x16x128xf32, #tpu.memory_space<vmem>>, %arg2: memref<1x128xf32, #tpu.memory_space<vmem>>, %arg3: memref<1x128xf32, #tpu.memory_space<vmem>>, %arg4: memref<2x16x128xf32, #tpu.memory_space<vmem>>) attributes {dimension_semantics = [#tpu.dimension_semantics<parallel>], iteration_bounds = array<i64: 1>, scalar_prefetch = 0 : i64, scratch_operands = 0 : i64, tpu.core_type = #tpu.core_type<tc>, window_params = [{transform_indices = @transform_0, window_bounds = array<i64: 2, 16, 128>}, {pipeline_mode = #tpu.pipeline_mode<synchronous>, transform_indices = @transform_1, window_bounds = array<i64: 1, 128>}, {pipeline_mode = #tpu.pipeline_mode<synchronous>, transform_indices = @transform_2, window_bounds = array<i64: 1, 128>}, {transform_indices = @transform_3, window_bounds = array<i64: 2, 16, 128>}]} {
    %c0 = arith.constant 0 : index
    %c0_0 = arith.constant 0 : index
    %c0_1 = arith.constant 0 : index
    %0 = vector.load %arg1[%c0, %c0_0, %c0_1] : memref<2x16x128xf32, #tpu.memory_space<vmem>>, vector<2x16x128xf32>
    %1 = vector.shape_cast %0 : vector<2x16x128xf32> to vector<32x128xf32>
    %c0_2 = arith.constant 0 : index
    %c0_3 = arith.constant 0 : index
    %2 = vector.load %arg2[%c0_2, %c0_3] : memref<1x128xf32, #tpu.memory_space<vmem>>, vector<1x128xf32>
    %3 = vector.broadcast %2 : vector<1x128xf32> to vector<32x128xf32>
    %4 = arith.mulf %1, %3 : vector<32x128xf32>
    %c0_4 = arith.constant 0 : index
    %c0_5 = arith.constant 0 : index
    %5 = vector.load %arg3[%c0_4, %c0_5] : memref<1x128xf32, #tpu.memory_space<vmem>>, vector<1x128xf32>
    %6 = vector.broadcast %5 : vector<1x128xf32> to vector<32x128xf32>
    %7 = arith.addf %4, %6 : vector<32x128xf32>
    %cst = arith.constant 0.000000e+00 : f32
    %8 = vector.broadcast %cst : f32 to vector<32x128xf32>
    %9 = arith.maximumf %7, %8 : vector<32x128xf32>
    %10 = vector.shape_cast %9 : vector<32x128xf32> to vector<2x16x128xf32>
    %c0_6 = arith.constant 0 : index
    %c0_7 = arith.constant 0 : index
    %c0_8 = arith.constant 0 : index
    %11 = vector.load %arg4[%c0_6, %c0_7, %c0_8] : memref<2x16x128xf32, #tpu.memory_space<vmem>>, vector<2x16x128xf32>
    tpu.vector_store %arg4[%c0_6, %c0_7, %c0_8], %10 {strides = array<i32>} : memref<2x16x128xf32, #tpu.memory_space<vmem>>, vector<2x16x128xf32>,
    return
  }
  func.func @transform_0(%arg0: i32) -> (i32, i32, i32) {
    %c0_i32 = arith.constant 0 : i32
    %c0_i32_0 = arith.constant 0 : i32
    %c0_i32_1 = arith.constant 0 : i32
    return %arg0, %c0_i32, %c0_i32_0 : i32, i32, i32
  }
  func.func @transform_1(%arg0: i32) -> (i32, i32) {
    %c0_i32 = arith.constant 0 : i32
    %c0_i32_0 = arith.constant 0 : i32
    %c0_i32_1 = arith.constant 0 : i32
    return %c0_i32, %c0_i32_0 : i32, i32
  }
  func.func @transform_2(%arg0: i32) -> (i32, i32) {
    %c0_i32 = arith.constant 0 : i32
    %c0_i32_0 = arith.constant 0 : i32
    %c0_i32_1 = arith.constant 0 : i32
    return %c0_i32, %c0_i32_0 : i32, i32
  }
  func.func @transform_3(%arg0: i32) -> (i32, i32, i32) {
    %c0_i32 = arith.constant 0 : i32
    %c0_i32_0 = arith.constant 0 : i32
    %c0_i32_1 = arith.constant 0 : i32
    return %arg0, %c0_i32, %c0_i32_0 : i32, i32, i32
  }
}

</mosaic_0001>

<llo_original>
// kernel: basic_conv_forward.5
$region0: #{basic_conv_forward.5}
  #allocation0 [shape = 'u32[]', space=smem, size = 0x4, offset = 0x4, fixed_abs, tag = 'smem constant byte address 0x4 - core index']
  #allocation1 [shape = 'u32[144,128]{1,0:T(1,128)}', space=vmem, size = 0x12000, scoped, tag = 'internal scratch']
  %s0 = inlined_call_operand.vmem [shape: f32[2,16,128], index: 0, kind: input, shape index: {}, may-alias: {0,3}]
  %s1 = inlined_call_operand.vmem [shape: f32[1,128], index: 1, kind: input, shape index: {}]
  %s2 = inlined_call_operand.vmem [shape: f32[1,128], index: 2, kind: input, shape index: {}]
  %s3 = inlined_call_operand.vmem [shape: f32[2,16,128], index: 3, kind: output, shape index: {}, may-alias: {0,3}]
  %s4 = sld [smem:[#allocation0]]
  $region22: #{basic_conv_forward.5} parent=0
    _
  %s6 = ssub.s32 1, %s4
  %s7 = scalar_select 0, %s6, %s4
  // Predicated region
  $region2: #{basic_conv_forward.5} parent=0 // pred_check
    _
  $region3: #{basic_conv_forward.5} parent=0 // pred_check_branch
    %9 = sbr.rel (0) target = $region5
  $region4: #{basic_conv_forward.5} parent=0 // pred_region
    _
  $region5: #{basic_conv_forward.5} parent=0 // pred_fallthru
    _
  // Predicated region
  $region6: #{basic_conv_forward.5} parent=0 // pred_check
    _
  $region7: #{basic_conv_forward.5} parent=0 // pred_check_branch
    %11 = sbr.rel (0) target = $region9
  $region8: #{basic_conv_forward.5} parent=0 // pred_region
    _
  $region9: #{basic_conv_forward.5} parent=0 // pred_fallthru
    _
  // Predicated region
  $region10: #{basic_conv_forward.5} parent=0 // pred_check
    _
  $region11: #{basic_conv_forward.5} parent=0 // pred_check_branch
    %13 = sbr.rel (0) target = $region13
  $region12: #{basic_conv_forward.5} parent=0 // pred_region
    _
  $region13: #{basic_conv_forward.5} parent=0 // pred_fallthru
    _
  %v14 = vld [vmem:[%s0] sm:$0xff]
  %v15 = vld [vmem:[%s0 + $0x8] sm:$0xff]
  %v16 = vld [vmem:[%s0 + $0x10] sm:$0xff]
  %v17 = vld [vmem:[%s0 + $0x18] sm:$0xff]
  %v18 = vld [vmem:[%s1] sm:$0x1]
  %v20 = vlaneseq
  %v21 = vshrl.u32 %v20, 7
  %v22 = vsub.s32 0, %v21
  %v23 = vrot.slane %v18, %v22
  %v25 = vmul.f32 %v14, %v23
  %v26 = vmul.f32 %v15, %v23
  %v27 = vmul.f32 %v16, %v23
  %v28 = vmul.f32 %v17, %v23
  %v29 = vld [vmem:[%s2] sm:$0x1]
  %v31 = vlaneseq
  %v32 = vshrl.u32 %v31, 7
  %v33 = vsub.s32 0, %v32
  %v34 = vrot.slane %v29, %v33
  %v36 = vadd.f32 %v25, %v34
  %v37 = vadd.f32 %v26, %v34
  %v38 = vadd.f32 %v27, %v34
  %v39 = vadd.f32 %v28, %v34
  %v40 = vmax.f32 %v36, 0.0
  %v41 = vmax.f32 %v37, 0.0
  %v42 = vmax.f32 %v38, 0.0
  %v43 = vmax.f32 %v39, 0.0
  %44 = vst [vmem:[%s3] sm:$0xff] %v40
  %45 = vst [vmem:[%s3 + $0x8] sm:$0xff] %v41
  %46 = vst [vmem:[%s3 + $0x10] sm:$0xff] %v42
  %47 = vst [vmem:[%s3 + $0x18] sm:$0xff] %v43
  // Predicated region
  $region14: #{basic_conv_forward.5} parent=0 // pred_check
    _
  $region15: #{basic_conv_forward.5} parent=0 // pred_check_branch
    %49 = sbr.rel (0) target = $region17
  $region16: #{basic_conv_forward.5} parent=0 // pred_region
    _
  $region17: #{basic_conv_forward.5} parent=0 // pred_fallthru
    _
  // Predicated region
  $region18: #{basic_conv_forward.5} parent=0 // pred_check
    _
  $region19: #{basic_conv_forward.5} parent=0 // pred_check_branch
    %51 = sbr.rel (0) target = $region21
  $region20: #{basic_conv_forward.5} parent=0 // pred_region
    _
  $region21: #{basic_conv_forward.5} parent=0 // pred_fallthru
    _

// kernel: basic_conv_forward.3
$region0: #{basic_conv_forward.3}
  #allocation0 [shape = 'u32[]', space=smem, size = 0x4, offset = 0x4, fixed_abs, tag = 'smem constant byte address 0x4 - core index']
  #allocation1 [shape = 'u32[144,128]{1,0:T(1,128)}', space=vmem, size = 0x12000, scoped, tag = 'internal scratch']
  %s0 = inlined_call_operand.vmem [shape: f32[2,16,4], index: 0, kind: input, shape index: {}]
  %s1 = inlined_call_operand.vmem [shape: f32[4,128], index: 1, kind: input, shape index: {}]
  %s2 = inlined_call_operand.vmem [shape: f32[1,2,128], index: 2, kind: output, shape index: {}]
  %s3 = sld [smem:[#allocation0]]
  $region18: #{basic_conv_forward.3} parent=0
    _
  %s5 = ssub.s32 1, %s3
  %s6 = scalar_select 0, %s5, %s3
  // Predicated region
  $region2: #{basic_conv_forward.3} parent=0 // pred_check
    _
  $region3: #{basic_conv_forward.3} parent=0 // pred_check_branch
    %8 = sbr.rel (0) target = $region5
  $region4: #{basic_conv_forward.3} parent=0 // pred_region
    _
  $region5: #{basic_conv_forward.3} parent=0 // pred_fallthru
    _
  // Predicated region
  $region6: #{basic_conv_forward.3} parent=0 // pred_check
    _
  $region7: #{basic_conv_forward.3} parent=0 // pred_check_branch
    %10 = sbr.rel (0) target = $region9
  $region8: #{basic_conv_forward.3} parent=0 // pred_region
    _
  $region9: #{basic_conv_forward.3} parent=0 // pred_fallthru
    _
  %v11 = vld [vmem:[%s0] sm:$0xff]
  %v12 = vld [vmem:[%s0 + $0x8] sm:$0xff]
  %v13 = vld [vmem:[%s0 + $0x10] sm:$0xff]
  %v14 = vld [vmem:[%s0 + $0x18] sm:$0xff]
  %v15 = vld [vmem:[%s1] sm:$0xf]
  %vm16 = vcmask 31744
  %v18 = vsel %vm16, %v11, 0
  %v21 = vsel %vm16, %v12, 0
  %v24 = vsel %vm16, %v13, 0
  %v27 = vsel %vm16, %v14, 0
  %vm29 = vcmask 1043456
  %v31 = vsel %vm29, %v15, 0
  %33 = vmatprep.subr.mxu0 0.0
  %34 = vmatpush1.msra.mxu0 %v31
  %35 = vmatprep.subr.mxu0 0.0
  %36 = vmatpush1.msra.mxu0 0.0
  %37 = vmatprep.subr.mxu0 0.0
  %38 = vmatpush1.msra.mxu0 0.0
  %39 = vmatprep.subr.mxu0 0.0
  %40 = vmatpush1.msra.mxu0 0.0
  %41 = vmatprep.subr.mxu0 0.0
  %42 = vmatpush1.msra.mxu0 0.0
  %43 = vmatprep.subr.mxu0 0.0
  %44 = vmatpush1.msra.mxu0 0.0
  %45 = vmatprep.subr.mxu0 0.0
  %46 = vmatpush1.msra.mxu0 0.0
  %47 = vmatprep.subr.mxu0 0.0
  %48 = vmatpush1.msra.mxu0 0.0
  %49 = vmatprep.subr.mxu0 0.0
  %50 = vmatpush1.msra.mxu0 0.0
  %51 = vmatprep.subr.mxu0 0.0
  %52 = vmatpush1.msra.mxu0 0.0
  %53 = vmatprep.subr.mxu0 0.0
  %54 = vmatpush1.msra.mxu0 0.0
  %55 = vmatprep.subr.mxu0 0.0
  %56 = vmatpush1.msra.mxu0 0.0
  %57 = vmatprep.subr.mxu0 0.0
  %58 = vmatpush1.msra.mxu0 0.0
  %59 = vmatprep.subr.mxu0 0.0
  %60 = vmatpush1.msra.mxu0 0.0
  %61 = vmatprep.subr.mxu0 0.0
  %62 = vmatpush1.msra.mxu0 0.0
  %63 = vmatprep.subr.mxu0 0.0
  %64 = vmatpush1.msra.mxu0 0.0
  %65 = vmatprep.subr.mxu0 0.0
  %66 = vmatpush1.msra.mxu0 0.0
  %67 = vmatprep.subr.mxu0 0.0
  %68 = vmatpush1.msra.mxu0 0.0
  %69 = vmatprep.subr.mxu0 0.0
  %70 = vmatpush1.msra.mxu0 0.0
  %71 = vmatprep.subr.mxu0 0.0
  %72 = vmatpush1.msra.mxu0 0.0
  %73 = vmatprep.subr.mxu0 0.0
  %74 = vmatpush1.msra.mxu0 0.0
  %75 = vmatprep.subr.mxu0 0.0
  %76 = vmatpush1.msra.mxu0 0.0
  %77 = vmatprep.subr.mxu0 0.0
  %78 = vmatpush1.msra.mxu0 0.0
  %79 = vmatprep.subr.mxu0 0.0
  %80 = vmatpush1.msra.mxu0 0.0
  %81 = vmatprep.subr.mxu0 0.0
  %82 = vmatpush1.msra.mxu0 0.0
  %83 = vmatprep.subr.mxu0 0.0
  %84 = vmatpush1.msra.mxu0 0.0
  %85 = vmatprep.subr.mxu0 0.0
  %86 = vmatpush1.msra.mxu0 0.0
  %87 = vmatprep.subr.mxu0 0.0
  %88 = vmatpush1.msra.mxu0 0.0
  %89 = vmatprep.subr.mxu0 0.0
  %90 = vmatpush1.msra.mxu0 0.0
  %91 = vmatprep.subr.mxu0 0.0
  %92 = vmatpush1.msra.mxu0 0.0
  %93 = vmatprep.subr.mxu0 0.0
  %94 = vmatpush1.msra.mxu0 0.0
  %95 = vmatprep.subr.mxu0 0.0
  %96 = vmatpush1.msra.mxu0 0.0
  %97 = vmatprep.mubr.f32.mxu0 0.0
  %98 = vmatmul.mubr.f32.gmra.mrb[0].mxu0 %v18
  %v99 = vpop.f32.mrb[0].mxu0
  %v100 = vadd.f32 0.0, %v99
  %v101 = vpop.f32.mrb[0].mxu0
  %102 = vmatprep.mubr.f32.mxu0 0.0
  %103 = vmatmul.mubr.f32.gmra.mrb[0].mxu0 %v21
  %v104 = vpop.f32.mrb[0].mxu0
  %v105 = vadd.f32 0.0, %v104
  %v106 = vpop.f32.mrb[0].mxu0
  %107 = vmatprep.mubr.f32.mxu0 0.0
  %108 = vmatmul.mubr.f32.gmra.mrb[0].mxu0 %v24
  %v109 = vpop.f32.mrb[0].mxu0
  %v110 = vadd.f32 0.0, %v109
  %v111 = vpop.f32.mrb[0].mxu0
  %112 = vmatprep.mubr.f32.mxu0 0.0
  %113 = vmatmul.mubr.f32.gmra.mrb[0].mxu0 %v27
  %v114 = vpop.f32.mrb[0].mxu0
  %v115 = vadd.f32 0.0, %v114
  %v116 = vpop.f32.mrb[0].mxu0
  %117 = vdwg.mxu0
  %v118 = vadd.f32 %v100, %v105
  %v119 = vadd.f32 %v118, %v110
  %v120 = vadd.f32 %v119, %v115
  %v121 = vrot.slane %v120, 4
  %v122 = vadd.f32 %v120, %v121
  %v123 = vrot.slane %v122, 2
  %v124 = vadd.f32 %v122, %v123
  %v125 = vrot.slane %v124, 1
  %v126 = vadd.f32 %v124, %v125
  %v127 = vmul.f32 %v100, %v100
  %v128 = vmul.f32 %v105, %v105
  %v129 = vmul.f32 %v110, %v110
  %v130 = vmul.f32 %v115, %v115
  %v131 = vadd.f32 %v127, %v128
  %v132 = vadd.f32 %v131, %v129
  %v133 = vadd.f32 %v132, %v130
  %v134 = vrot.slane %v133, 4
  %v135 = vadd.f32 %v133, %v134
  %v136 = vrot.slane %v135, 2
  %v137 = vadd.f32 %v135, %v136
  %v138 = vrot.slane %v137, 1
  %v139 = vadd.f32 %v137, %v138
  %vm140 = vcmask 1040384
  %v141 = vsel %vm140, %v126, %v139
  %142 = vst [vmem:[%s2] sm:$0x3] %v141
  // Predicated region
  $region10: #{basic_conv_forward.3} parent=0 // pred_check
    _
  $region11: #{basic_conv_forward.3} parent=0 // pred_check_branch
    %144 = sbr.rel (0) target = $region13
  $region12: #{basic_conv_forward.3} parent=0 // pred_region
    _
  $region13: #{basic_conv_forward.3} parent=0 // pred_fallthru
    _
  // Predicated region
  $region14: #{basic_conv_forward.3} parent=0 // pred_check
    _
  $region15: #{basic_conv_forward.3} parent=0 // pred_check_branch
    %146 = sbr.rel (0) target = $region17
  $region16: #{basic_conv_forward.3} parent=0 // pred_region
    _
  $region17: #{basic_conv_forward.3} parent=0 // pred_fallthru
    _

// kernel: basic_conv_forward.4
$region0: #{basic_conv_forward.4}
  #allocation0 [shape = 'u32[]', space=smem, size = 0x4, offset = 0x4, fixed_abs, tag = 'smem constant byte address 0x4 - core index']
  #allocation1 [shape = 'u32[144,128]{1,0:T(1,128)}', space=vmem, size = 0x12000, scoped, tag = 'internal scratch']
  %s0 = inlined_call_operand.vmem [shape: f32[2,16,4], index: 0, kind: input, shape index: {}]
  %s1 = inlined_call_operand.vmem [shape: f32[4,128], index: 1, kind: input, shape index: {}]
  %s2 = inlined_call_operand.vmem [shape: f32[1,128], index: 2, kind: input, shape index: {}]
  %s3 = inlined_call_operand.vmem [shape: f32[1,128], index: 3, kind: input, shape index: {}]
  %s4 = inlined_call_operand.hbm [shape: f32[3,128,128], index: 4, kind: input, shape index: {}]
  %s5 = inlined_call_operand.vmem [shape: f32[32,2], index: 5, kind: input, shape index: {}]
  %s6 = inlined_call_operand.vmem [shape: f32[2,16,128], index: 6, kind: output, shape index: {0}]
  %s7 = inlined_call_operand.vmem [shape: f32[1,2,128], index: 7, kind: output, shape index: {1}]
  %8 = xla_tuple %s6, %s7
  %s9 = sld [smem:[#allocation0]]
  $region46: #{basic_conv_forward.4} parent=0
    _
  %s11 = ssub.s32 1, %s9
  %s12 = scalar_select 0, %s11, %s9
  $region1: #{basic_conv_forward.4} parent=0
    #allocation2 [shape = 'u8[196608]{0}', space=vmem, size = 0x30000, scoped, tag = 'input window, operand 4, single buffered']
    #allocation3 [shape = 's32[1]{0}', space=sflag, size = 0x4, scoped, tag = 'scoped memory for basic_conv_forward.4']
    %13 = vsyncpa [#allocation3], 0
    // Predicated region
    $region2: #{basic_conv_forward.4} parent=1 // pred_check
      _
    $region3: #{basic_conv_forward.4} parent=1 // pred_check_branch
      %15 = sbr.rel (0) target = $region5
    $region4: #{basic_conv_forward.4} parent=1 // pred_region
      _
    $region5: #{basic_conv_forward.4} parent=1 // pred_fallthru
      _
    // Predicated region
    $region6: #{basic_conv_forward.4} parent=1 // pred_check
      _
    $region7: #{basic_conv_forward.4} parent=1 // pred_check_branch
      %17 = sbr.rel (0) target = $region9
    $region8: #{basic_conv_forward.4} parent=1 // pred_region
      _
    $region9: #{basic_conv_forward.4} parent=1 // pred_fallthru
      _
    // Predicated region
    $region10: #{basic_conv_forward.4} parent=1 // pred_check
      _
    $region11: #{basic_conv_forward.4} parent=1 // pred_check_branch
      %19 = sbr.rel (0) target = $region13
    $region12: #{basic_conv_forward.4} parent=1 // pred_region
      _
    $region13: #{basic_conv_forward.4} parent=1 // pred_fallthru
      _
    // Predicated region
    $region14: #{basic_conv_forward.4} parent=1 // pred_check
      _
    $region15: #{basic_conv_forward.4} parent=1 // pred_check_branch
      %21 = sbr.rel (0) target = $region17
    $region16: #{basic_conv_forward.4} parent=1 // pred_region
      _
    $region17: #{basic_conv_forward.4} parent=1 // pred_fallthru
      _
    // Predicated region
    $region18: #{basic_conv_forward.4} parent=1 // pred_check
      _
    $region19: #{basic_conv_forward.4} parent=1 // pred_check_branch
      %23 = sbr.rel (0) target = $region21
    $region20: #{basic_conv_forward.4} parent=1 // pred_region
      %s25 = ssub.s32 6144, 6144
      %26 = vsyncadd [#allocation3], %s25
      %s27 = sshll.u32 [#allocation2], 4
      %s28 = int_to_ptr.vmem [resolvable:$true] %s27
      %33 = dma.hbm_to_vmem [thread:$0]  %s4, 6144, %s28, [#allocation3], 128, 128, 8
    $region21: #{basic_conv_forward.4} parent=1 // pred_fallthru
      _
    // Predicated region
    $region22: #{basic_conv_forward.4} parent=1 // pred_check
      _
    $region23: #{basic_conv_forward.4} parent=1 // pred_check_branch
      %35 = sbr.rel (0) target = $region25
    $region24: #{basic_conv_forward.4} parent=1 // pred_region
      _
    $region25: #{basic_conv_forward.4} parent=1 // pred_fallthru
      _
    // Predicated region
    $region26: #{basic_conv_forward.4} parent=1 // pred_check
      _
    $region27: #{basic_conv_forward.4} parent=1 // pred_check_branch
      %37 = sbr.rel (0) target = $region29
    $region28: #{basic_conv_forward.4} parent=1 // pred_region
      %38 = dma.done [#allocation3], 6144
    $region29: #{basic_conv_forward.4} parent=1 // pred_fallthru
      _
    %v39 = vld [vmem:[%s0] sm:$0xff]
    %v40 = vld [vmem:[%s0 + $0x8] sm:$0xff]
    %v41 = vld [vmem:[%s0 + $0x10] sm:$0xff]
    %v42 = vld [vmem:[%s0 + $0x18] sm:$0xff]
    %v43 = vld [vmem:[%s1] sm:$0xf]
    %vm44 = vcmask 31744
    %v46 = vsel %vm44, %v39, 0
    %v49 = vsel %vm44, %v40, 0
    %v52 = vsel %vm44, %v41, 0
    %v55 = vsel %vm44, %v42, 0
    %vm57 = vcmask 1043456
    %v59 = vsel %vm57, %v43, 0
    %61 = vmatprep.subr.mxu0 0.0
    %62 = vmatpush1.msra.mxu0 %v59
    %63 = vmatprep.subr.mxu0 0.0
    %64 = vmatpush1.msra.mxu0 0.0
    %65 = vmatprep.subr.mxu0 0.0
    %66 = vmatpush1.msra.mxu0 0.0
    %67 = vmatprep.subr.mxu0 0.0
    %68 = vmatpush1.msra.mxu0 0.0
    %69 = vmatprep.subr.mxu0 0.0
    %70 = vmatpush1.msra.mxu0 0.0
    %71 = vmatprep.subr.mxu0 0.0
    %72 = vmatpush1.msra.mxu0 0.0
    %73 = vmatprep.subr.mxu0 0.0
    %74 = vmatpush1.msra.mxu0 0.0
    %75 = vmatprep.subr.mxu0 0.0
    %76 = vmatpush1.msra.mxu0 0.0
    %77 = vmatprep.subr.mxu0 0.0
    %78 = vmatpush1.msra.mxu0 0.0
    %79 = vmatprep.subr.mxu0 0.0
    %80 = vmatpush1.msra.mxu0 0.0
    %81 = vmatprep.subr.mxu0 0.0
    %82 = vmatpush1.msra.mxu0 0.0
    %83 = vmatprep.subr.mxu0 0.0
    %84 = vmatpush1.msra.mxu0 0.0
    %85 = vmatprep.subr.mxu0 0.0
    %86 = vmatpush1.msra.mxu0 0.0
    %87 = vmatprep.subr.mxu0 0.0
    %88 = vmatpush1.msra.mxu0 0.0
    %89 = vmatprep.subr.mxu0 0.0
    %90 = vmatpush1.msra.mxu0 0.0
    %91 = vmatprep.subr.mxu0 0.0
    %92 = vmatpush1.msra.mxu0 0.0
    %93 = vmatprep.subr.mxu0 0.0
    %94 = vmatpush1.msra.mxu0 0.0
    %95 = vmatprep.subr.mxu0 0.0
    %96 = vmatpush1.msra.mxu0 0.0
    %97 = vmatprep.subr.mxu0 0.0
    %98 = vmatpush1.msra.mxu0 0.0
    %99 = vmatprep.subr.mxu0 0.0
    %100 = vmatpush1.msra.mxu0 0.0
    %101 = vmatprep.subr.mxu0 0.0
    %102 = vmatpush1.msra.mxu0 0.0
    %103 = vmatprep.subr.mxu0 0.0
    %104 = vmatpush1.msra.mxu0 0.0
    %105 = vmatprep.subr.mxu0 0.0
    %106 = vmatpush1.msra.mxu0 0.0
    %107 = vmatprep.subr.mxu0 0.0
    %108 = vmatpush1.msra.mxu0 0.0
    %109 = vmatprep.subr.mxu0 0.0
    %110 = vmatpush1.msra.mxu0 0.0
    %111 = vmatprep.subr.mxu0 0.0
    %112 = vmatpush1.msra.mxu0 0.0
    %113 = vmatprep.subr.mxu0 0.0
    %114 = vmatpush1.msra.mxu0 0.0
    %115 = vmatprep.subr.mxu0 0.0
    %116 = vmatpush1.msra.mxu0 0.0
    %117 = vmatprep.subr.mxu0 0.0
    %118 = vmatpush1.msra.mxu0 0.0
    %119 = vmatprep.subr.mxu0 0.0
    %120 = vmatpush1.msra.mxu0 0.0
    %121 = vmatprep.subr.mxu0 0.0
    %122 = vmatpush1.msra.mxu0 0.0
    %123 = vmatprep.subr.mxu0 0.0
    %124 = vmatpush1.msra.mxu0 0.0
    %125 = vmatprep.mubr.f32.mxu0 0.0
    %126 = vmatmul.mubr.f32.gmra.mrb[0].mxu0 %v46
    %v127 = vpop.f32.mrb[0].mxu0
    %v128 = vadd.f32 0.0, %v127
    %v129 = vpop.f32.mrb[0].mxu0
    %130 = vmatprep.mubr.f32.mxu0 0.0
    %131 = vmatmul.mubr.f32.gmra.mrb[0].mxu0 %v49
    %v132 = vpop.f32.mrb[0].mxu0
    %v133 = vadd.f32 0.0, %v132
    %v134 = vpop.f32.mrb[0].mxu0
    %135 = vmatprep.mubr.f32.mxu0 0.0
    %136 = vmatmul.mubr.f32.gmra.mrb[0].mxu0 %v52
    %v137 = vpop.f32.mrb[0].mxu0
    %v138 = vadd.f32 0.0, %v137
    %v139 = vpop.f32.mrb[0].mxu0
    %140 = vmatprep.mubr.f32.mxu0 0.0
    %141 = vmatmul.mubr.f32.gmra.mrb[0].mxu0 %v55
    %v142 = vpop.f32.mrb[0].mxu0
    %v143 = vadd.f32 0.0, %v142
    %v144 = vpop.f32.mrb[0].mxu0
    %145 = vdwg.mxu0
    %v146 = vld [vmem:[%s2] sm:$0x1]
    %v148 = vlaneseq
    %v149 = vshrl.u32 %v148, 7
    %v150 = vsub.s32 0, %v149
    %v151 = vrot.slane %v146, %v150
    %v153 = vmul.f32 %v128, %v151
    %v154 = vmul.f32 %v133, %v151
    %v155 = vmul.f32 %v138, %v151
    %v156 = vmul.f32 %v143, %v151
    %v157 = vld [vmem:[%s3] sm:$0x1]
    %v159 = vlaneseq
    %v160 = vshrl.u32 %v159, 7
    %v161 = vsub.s32 0, %v160
    %v162 = vrot.slane %v157, %v161
    %v164 = vadd.f32 %v153, %v162
    %v165 = vadd.f32 %v154, %v162
    %v166 = vadd.f32 %v155, %v162
    %v167 = vadd.f32 %v156, %v162
    %v168 = vmax.f32 %v164, 0.0
    %v169 = vmax.f32 %v165, 0.0
    %v170 = vmax.f32 %v166, 0.0
    %v171 = vmax.f32 %v167, 0.0
    %v172 = vld [vmem:[%s5] sm:$0xff]
    %v173 = vld [vmem:[%s5 + $0x8] sm:$0xff]
    %v174 = vld [vmem:[%s5 + $0x10] sm:$0xff]
    %v175 = vld [vmem:[%s5 + $0x18] sm:$0xff]
    %v176 = vrot.slane %v168, 7
    %v177 = vrot.slane %v169, 7
    %v178 = vrot.slane %v170, 7
    %v179 = vrot.slane %v171, 7
    %v180 = vlaneseq
    %v181 = vshrl.u32 %v180, 7
    %vm182 = vcmp.lt.s32.totalorder %v181, 1
    %v183 = vsel %vm182, %v178, %v179
    %v184 = vsel %vm182, %v177, %v178
    %v185 = vsel %vm182, %v176, %v177
    %v186 = vsel %vm182, %v179, %v176
    %188 = vset.pattern.permute.xlu0 0
    %189 = vperm.xlu0 %188, %v172
    %v190 = vpop.permute.xlu0 %189
    %193 = vset.pattern.permute.xlu0 0
    %194 = vperm.xlu0 %193, %v173
    %v195 = vpop.permute.xlu0 %194
    %198 = vset.pattern.permute.xlu0 0
    %199 = vperm.xlu0 %198, %v174
    %v200 = vpop.permute.xlu0 %199
    %203 = vset.pattern.permute.xlu0 0
    %204 = vperm.xlu0 %203, %v175
    %v205 = vpop.permute.xlu0 %204
    %v207 = vmul.f32 %v186, %v190
    %v208 = vmul.f32 %v185, %v195
    %v209 = vmul.f32 %v184, %v200
    %v210 = vmul.f32 %v183, %v205
    %v211 = vrot.slane %v168, 1
    %v212 = vrot.slane %v169, 1
    %v213 = vrot.slane %v170, 1
    %v214 = vrot.slane %v171, 1
    %vm215 = vcmp.lt.s32.totalorder %v181, 7
    %v216 = vsel %vm215, %v213, %v214
    %v217 = vsel %vm215, %v212, %v213
    %v218 = vsel %vm215, %v211, %v212
    %v219 = vsel %vm215, %v214, %v211
    %220 = vset.pattern.permute.xlu0 1
    %221 = vperm.xlu0 %220, %v172
    %v222 = vpop.permute.xlu0 %221
    %224 = vset.pattern.permute.xlu0 1
    %225 = vperm.xlu0 %224, %v173
    %v226 = vpop.permute.xlu0 %225
    %228 = vset.pattern.permute.xlu0 1
    %229 = vperm.xlu0 %228, %v174
    %v230 = vpop.permute.xlu0 %229
    %232 = vset.pattern.permute.xlu0 1
    %233 = vperm.xlu0 %232, %v175
    %v234 = vpop.permute.xlu0 %233
    %v236 = vmul.f32 %v218, %v222
    %v237 = vmul.f32 %v217, %v226
    %v238 = vmul.f32 %v216, %v230
    %v239 = vmul.f32 %v219, %v234
    %s240 = scalar_lea.vmem [#allocation2], 128
    %v241 = vld [vmem:[%s240] sm:$0xff]
    %v242 = vld [vmem:[%s240 + $0x8] sm:$0xff]
    %v243 = vld [vmem:[%s240 + $0x10] sm:$0xff]
    %v244 = vld [vmem:[%s240 + $0x18] sm:$0xff]
    %v245 = vld [vmem:[%s240 + $0x20] sm:$0xff]
    %v246 = vld [vmem:[%s240 + $0x28] sm:$0xff]
    %v247 = vld [vmem:[%s240 + $0x30] sm:$0xff]
    %v248 = vld [vmem:[%s240 + $0x38] sm:$0xff]
    %v249 = vld [vmem:[%s240 + $0x40] sm:$0xff]
    %v250 = vld [vmem:[%s240 + $0x48] sm:$0xff]
    %v251 = vld [vmem:[%s240 + $0x50] sm:$0xff]
    %v252 = vld [vmem:[%s240 + $0x58] sm:$0xff]
    %v253 = vld [vmem:[%s240 + $0x60] sm:$0xff]
    %v254 = vld [vmem:[%s240 + $0x68] sm:$0xff]
    %v255 = vld [vmem:[%s240 + $0x70] sm:$0xff]
    %v256 = vld [vmem:[%s240 + $0x78] sm:$0xff]
    %v257 = vld [vmem:[#allocation2] sm:$0xff]
    %v258 = vld [vmem:[#allocation2 + $0x8] sm:$0xff]
    %v259 = vld [vmem:[#allocation2 + $0x10] sm:$0xff]
    %v260 = vld [vmem:[#allocation2 + $0x18] sm:$0xff]
    %v261 = vld [vmem:[#allocation2 + $0x20] sm:$0xff]
    %v262 = vld [vmem:[#allocation2 + $0x28] sm:$0xff]
    %v263 = vld [vmem:[#allocation2 + $0x30] sm:$0xff]
    %v264 = vld [vmem:[#allocation2 + $0x38] sm:$0xff]
    %v265 = vld [vmem:[#allocation2 + $0x40] sm:$0xff]
    %v266 = vld [vmem:[#allocation2 + $0x48] sm:$0xff]
    %v267 = vld [vmem:[#allocation2 + $0x50] sm:$0xff]
    %v268 = vld [vmem:[#allocation2 + $0x58] sm:$0xff]
    %v269 = vld [vmem:[#allocation2 + $0x60] sm:$0xff]
    %v270 = vld [vmem:[#allocation2 + $0x68] sm:$0xff]
    %v271 = vld [vmem:[#allocation2 + $0x70] sm:$0xff]
    %v272 = vld [vmem:[#allocation2 + $0x78] sm:$0xff]
    %273 = vmatprep.subr.mxu0 0.0
    %274 = vmatpush1.msra.mxu0 %v257
    %275 = vmatprep.subr.mxu0 0.0
    %276 = vmatpush1.msra.mxu0 %v258
    %277 = vmatprep.subr.mxu0 0.0
    %278 = vmatpush1.msra.mxu0 %v259
    %279 = vmatprep.subr.mxu0 0.0
    %280 = vmatpush1.msra.mxu0 %v260
    %281 = vmatprep.subr.mxu0 0.0
    %282 = vmatpush1.msra.mxu0 %v261
    %283 = vmatprep.subr.mxu0 0.0
    %284 = vmatpush1.msra.mxu0 %v262
    %285 = vmatprep.subr.mxu0 0.0
    %286 = vmatpush1.msra.mxu0 %v263
    %287 = vmatprep.subr.mxu0 0.0
    %288 = vmatpush1.msra.mxu0 %v264
    %289 = vmatprep.subr.mxu0 0.0
    %290 = vmatpush1.msra.mxu0 %v265
    %291 = vmatprep.subr.mxu0 0.0
    %292 = vmatpush1.msra.mxu0 %v266
    %293 = vmatprep.subr.mxu0 0.0
    %294 = vmatpush1.msra.mxu0 %v267
    %295 = vmatprep.subr.mxu0 0.0
    %296 = vmatpush1.msra.mxu0 %v268
    %297 = vmatprep.subr.mxu0 0.0
    %298 = vmatpush1.msra.mxu0 %v269
    %299 = vmatprep.subr.mxu0 0.0
    %300 = vmatpush1.msra.mxu0 %v270
    %301 = vmatprep.subr.mxu0 0.0
    %302 = vmatpush1.msra.mxu0 %v271
    %303 = vmatprep.subr.mxu0 0.0
    %304 = vmatpush1.msra.mxu0 %v272
    %305 = vmatprep.subr.mxu0 0.0
    %306 = vmatpush1.msra.mxu0 0.0
    %307 = vmatprep.subr.mxu0 0.0
    %308 = vmatpush1.msra.mxu0 0.0
    %309 = vmatprep.subr.mxu0 0.0
    %310 = vmatpush1.msra.mxu0 0.0
    %311 = vmatprep.subr.mxu0 0.0
    %312 = vmatpush1.msra.mxu0 0.0
    %313 = vmatprep.subr.mxu0 0.0
    %314 = vmatpush1.msra.mxu0 0.0
    %315 = vmatprep.subr.mxu0 0.0
    %316 = vmatpush1.msra.mxu0 0.0
    %317 = vmatprep.subr.mxu0 0.0
    %318 = vmatpush1.msra.mxu0 0.0
    %319 = vmatprep.subr.mxu0 0.0
    %320 = vmatpush1.msra.mxu0 0.0
    %321 = vmatprep.subr.mxu0 0.0
    %322 = vmatpush1.msra.mxu0 0.0
    %323 = vmatprep.subr.mxu0 0.0
    %324 = vmatpush1.msra.mxu0 0.0
    %325 = vmatprep.subr.mxu0 0.0
    %326 = vmatpush1.msra.mxu0 0.0
    %327 = vmatprep.subr.mxu0 0.0
    %328 = vmatpush1.msra.mxu0 0.0
    %329 = vmatprep.subr.mxu0 0.0
    %330 = vmatpush1.msra.mxu0 0.0
    %331 = vmatprep.subr.mxu0 0.0
    %332 = vmatpush1.msra.mxu0 0.0
    %333 = vmatprep.subr.mxu0 0.0
    %334 = vmatpush1.msra.mxu0 0.0
    %335 = vmatprep.subr.mxu0 0.0
    %336 = vmatpush1.msra.mxu0 0.0
    %337 = vmatprep.mubr.f32.mxu0 0.0
    %338 = vmatmul.mubr.f32.gmra.mrb[0].mxu0 %v207
    %v339 = vpop.f32.mrb[0].mxu0
    %v340 = vadd.f32 0.0, %v339
    %v341 = vpop.f32.mrb[0].mxu0
    %342 = vmatprep.mubr.f32.mxu0 0.0
    %343 = vmatmul.mubr.f32.gmra.mrb[0].mxu0 %v208
    %v344 = vpop.f32.mrb[0].mxu0
    %v345 = vadd.f32 0.0, %v344
    %v346 = vpop.f32.mrb[0].mxu0
    %347 = vmatprep.mubr.f32.mxu0 0.0
    %348 = vmatmul.mubr.f32.gmra.mrb[0].mxu0 %v209
    %v349 = vpop.f32.mrb[0].mxu0
    %v350 = vadd.f32 0.0, %v349
    %v351 = vpop.f32.mrb[0].mxu0
    %352 = vmatprep.mubr.f32.mxu0 0.0
    %353 = vmatmul.mubr.f32.gmra.mrb[0].mxu0 %v210
    %v354 = vpop.f32.mrb[0].mxu0
    %v355 = vadd.f32 0.0, %v354
    %v356 = vpop.f32.mrb[0].mxu0
    %357 = vdwg.mxu0
    %358 = vmatprep.subr.mxu0 0.0
    %359 = vmatpush1.msra.mxu0 %v241
    %360 = vmatprep.subr.mxu0 0.0
    %361 = vmatpush1.msra.mxu0 %v242
    %362 = vmatprep.subr.mxu0 0.0
    %363 = vmatpush1.msra.mxu0 %v243
    %364 = vmatprep.subr.mxu0 0.0
    %365 = vmatpush1.msra.mxu0 %v244
    %366 = vmatprep.subr.mxu0 0.0
    %367 = vmatpush1.msra.mxu0 %v245
    %368 = vmatprep.subr.mxu0 0.0
    %369 = vmatpush1.msra.mxu0 %v246
    %370 = vmatprep.subr.mxu0 0.0
    %371 = vmatpush1.msra.mxu0 %v247
    %372 = vmatprep.subr.mxu0 0.0
    %373 = vmatpush1.msra.mxu0 %v248
    %374 = vmatprep.subr.mxu0 0.0
    %375 = vmatpush1.msra.mxu0 %v249
    %376 = vmatprep.subr.mxu0 0.0
    %377 = vmatpush1.msra.mxu0 %v250
    %378 = vmatprep.subr.mxu0 0.0
    %379 = vmatpush1.msra.mxu0 %v251
    %380 = vmatprep.subr.mxu0 0.0
    %381 = vmatpush1.msra.mxu0 %v252
    %382 = vmatprep.subr.mxu0 0.0
    %383 = vmatpush1.msra.mxu0 %v253
    %384 = vmatprep.subr.mxu0 0.0
    %385 = vmatpush1.msra.mxu0 %v254
    %386 = vmatprep.subr.mxu0 0.0
    %387 = vmatpush1.msra.mxu0 %v255
    %388 = vmatprep.subr.mxu0 0.0
    %389 = vmatpush1.msra.mxu0 %v256
    %390 = vmatprep.subr.mxu0 0.0
    %391 = vmatpush1.msra.mxu0 0.0
    %392 = vmatprep.subr.mxu0 0.0
    %393 = vmatpush1.msra.mxu0 0.0
    %394 = vmatprep.subr.mxu0 0.0
    %395 = vmatpush1.msra.mxu0 0.0
    %396 = vmatprep.subr.mxu0 0.0
    %397 = vmatpush1.msra.mxu0 0.0
    %398 = vmatprep.subr.mxu0 0.0
    %399 = vmatpush1.msra.mxu0 0.0
    %400 = vmatprep.subr.mxu0 0.0
    %401 = vmatpush1.msra.mxu0 0.0
    %402 = vmatprep.subr.mxu0 0.0
    %403 = vmatpush1.msra.mxu0 0.0
    %404 = vmatprep.subr.mxu0 0.0
    %405 = vmatpush1.msra.mxu0 0.0
    %406 = vmatprep.subr.mxu0 0.0
    %407 = vmatpush1.msra.mxu0 0.0
    %408 = vmatprep.subr.mxu0 0.0
    %409 = vmatpush1.msra.mxu0 0.0
    %410 = vmatprep.subr.mxu0 0.0
    %411 = vmatpush1.msra.mxu0 0.0
    %412 = vmatprep.subr.mxu0 0.0
    %413 = vmatpush1.msra.mxu0 0.0
    %414 = vmatprep.subr.mxu0 0.0
    %415 = vmatpush1.msra.mxu0 0.0
    %416 = vmatprep.subr.mxu0 0.0
    %417 = vmatpush1.msra.mxu0 0.0
    %418 = vmatprep.subr.mxu0 0.0
    %419 = vmatpush1.msra.mxu0 0.0
    %420 = vmatprep.subr.mxu0 0.0
    %421 = vmatpush1.msra.mxu0 0.0
    %422 = vmatprep.mubr.f32.mxu0 0.0
    %423 = vmatmul.mubr.f32.gmra.mrb[0].mxu0 %v168
    %v424 = vpop.f32.mrb[0].mxu0
    %v425 = vadd.f32 %v340, %v424
    %v426 = vpop.f32.mrb[0].mxu0
    %427 = vmatprep.mubr.f32.mxu0 0.0
    %428 = vmatmul.mubr.f32.gmra.mrb[0].mxu0 %v169
    %v429 = vpop.f32.mrb[0].mxu0
    %v430 = vadd.f32 %v345, %v429
    %v431 = vpop.f32.mrb[0].mxu0
    %432 = vmatprep.mubr.f32.mxu0 0.0
    %433 = vmatmul.mubr.f32.gmra.mrb[0].mxu0 %v170
    %v434 = vpop.f32.mrb[0].mxu0
    %v435 = vadd.f32 %v350, %v434
    %v436 = vpop.f32.mrb[0].mxu0
    %437 = vmatprep.mubr.f32.mxu0 0.0
    %438 = vmatmul.mubr.f32.gmra.mrb[0].mxu0 %v171
    %v439 = vpop.f32.mrb[0].mxu0
    %v440 = vadd.f32 %v355, %v439
    %v441 = vpop.f32.mrb[0].mxu0
    %442 = vdwg.mxu0
    %s443 = scalar_lea.vmem [#allocation2], 256
    %v444 = vld [vmem:[%s443] sm:$0xff]
    %v445 = vld [vmem:[%s443 + $0x8] sm:$0xff]
    %v446 = vld [vmem:[%s443 + $0x10] sm:$0xff]
    %v447 = vld [vmem:[%s443 + $0x18] sm:$0xff]
    %v448 = vld [vmem:[%s443 + $0x20] sm:$0xff]
    %v449 = vld [vmem:[%s443 + $0x28] sm:$0xff]
    %v450 = vld [vmem:[%s443 + $0x30] sm:$0xff]
    %v451 = vld [vmem:[%s443 + $0x38] sm:$0xff]
    %v452 = vld [vmem:[%s443 + $0x40] sm:$0xff]
    %v453 = vld [vmem:[%s443 + $0x48] sm:$0xff]
    %v454 = vld [vmem:[%s443 + $0x50] sm:$0xff]
    %v455 = vld [vmem:[%s443 + $0x58] sm:$0xff]
    %v456 = vld [vmem:[%s443 + $0x60] sm:$0xff]
    %v457 = vld [vmem:[%s443 + $0x68] sm:$0xff]
    %v458 = vld [vmem:[%s443 + $0x70] sm:$0xff]
    %v459 = vld [vmem:[%s443 + $0x78] sm:$0xff]
    %460 = vmatprep.subr.mxu0 0.0
    %461 = vmatpush1.msra.mxu0 %v444
    %462 = vmatprep.subr.mxu0 0.0
    %463 = vmatpush1.msra.mxu0 %v445
    %464 = vmatprep.subr.mxu0 0.0
    %465 = vmatpush1.msra.mxu0 %v446
    %466 = vmatprep.subr.mxu0 0.0
    %467 = vmatpush1.msra.mxu0 %v447
    %468 = vmatprep.subr.mxu0 0.0
    %469 = vmatpush1.msra.mxu0 %v448
    %470 = vmatprep.subr.mxu0 0.0
    %471 = vmatpush1.msra.mxu0 %v449
    %472 = vmatprep.subr.mxu0 0.0
    %473 = vmatpush1.msra.mxu0 %v450
    %474 = vmatprep.subr.mxu0 0.0
    %475 = vmatpush1.msra.mxu0 %v451
    %476 = vmatprep.subr.mxu0 0.0
    %477 = vmatpush1.msra.mxu0 %v452
    %478 = vmatprep.subr.mxu0 0.0
    %479 = vmatpush1.msra.mxu0 %v453
    %480 = vmatprep.subr.mxu0 0.0
    %481 = vmatpush1.msra.mxu0 %v454
    %482 = vmatprep.subr.mxu0 0.0
    %483 = vmatpush1.msra.mxu0 %v455
    %484 = vmatprep.subr.mxu0 0.0
    %485 = vmatpush1.msra.mxu0 %v456
    %486 = vmatprep.subr.mxu0 0.0
    %487 = vmatpush1.msra.mxu0 %v457
    %488 = vmatprep.subr.mxu0 0.0
    %489 = vmatpush1.msra.mxu0 %v458
    %490 = vmatprep.subr.mxu0 0.0
    %491 = vmatpush1.msra.mxu0 %v459
    %492 = vmatprep.subr.mxu0 0.0
    %493 = vmatpush1.msra.mxu0 0.0
    %494 = vmatprep.subr.mxu0 0.0
    %495 = vmatpush1.msra.mxu0 0.0
    %496 = vmatprep.subr.mxu0 0.0
    %497 = vmatpush1.msra.mxu0 0.0
    %498 = vmatprep.subr.mxu0 0.0
    %499 = vmatpush1.msra.mxu0 0.0
    %500 = vmatprep.subr.mxu0 0.0
    %501 = vmatpush1.msra.mxu0 0.0
    %502 = vmatprep.subr.mxu0 0.0
    %503 = vmatpush1.msra.mxu0 0.0
    %504 = vmatprep.subr.mxu0 0.0
    %505 = vmatpush1.msra.mxu0 0.0
    %506 = vmatprep.subr.mxu0 0.0
    %507 = vmatpush1.msra.mxu0 0.0
    %508 = vmatprep.subr.mxu0 0.0
    %509 = vmatpush1.msra.mxu0 0.0
    %510 = vmatprep.subr.mxu0 0.0
    %511 = vmatpush1.msra.mxu0 0.0
    %512 = vmatprep.subr.mxu0 0.0
    %513 = vmatpush1.msra.mxu0 0.0
    %514 = vmatprep.subr.mxu0 0.0
    %515 = vmatpush1.msra.mxu0 0.0
    %516 = vmatprep.subr.mxu0 0.0
    %517 = vmatpush1.msra.mxu0 0.0
    %518 = vmatprep.subr.mxu0 0.0
    %519 = vmatpush1.msra.mxu0 0.0
    %520 = vmatprep.subr.mxu0 0.0
    %521 = vmatpush1.msra.mxu0 0.0
    %522 = vmatprep.subr.mxu0 0.0
    %523 = vmatpush1.msra.mxu0 0.0
    %524 = vmatprep.mubr.f32.mxu0 0.0
    %525 = vmatmul.mubr.f32.gmra.mrb[0].mxu0 %v236
    %v526 = vpop.f32.mrb[0].mxu0
    %v527 = vadd.f32 0.0, %v526
    %v528 = vpop.f32.mrb[0].mxu0
    %529 = vmatprep.mubr.f32.mxu0 0.0
    %530 = vmatmul.mubr.f32.gmra.mrb[0].mxu0 %v237
    %v531 = vpop.f32.mrb[0].mxu0
    %v532 = vadd.f32 0.0, %v531
    %v533 = vpop.f32.mrb[0].mxu0
    %534 = vmatprep.mubr.f32.mxu0 0.0
    %535 = vmatmul.mubr.f32.gmra.mrb[0].mxu0 %v238
    %v536 = vpop.f32.mrb[0].mxu0
    %v537 = vadd.f32 0.0, %v536
    %v538 = vpop.f32.mrb[0].mxu0
    %539 = vmatprep.mubr.f32.mxu0 0.0
    %540 = vmatmul.mubr.f32.gmra.mrb[0].mxu0 %v239
    %v541 = vpop.f32.mrb[0].mxu0
    %v542 = vadd.f32 0.0, %v541
    %v543 = vpop.f32.mrb[0].mxu0
    %544 = vdwg.mxu0
    %v545 = vadd.f32 %v425, %v527
    %v546 = vadd.f32 %v430, %v532
    %v547 = vadd.f32 %v435, %v537
    %v548 = vadd.f32 %v440, %v542
    %549 = vst [vmem:[%s6] sm:$0xff] %v545
    %550 = vst [vmem:[%s6 + $0x8] sm:$0xff] %v546
    %551 = vst [vmem:[%s6 + $0x10] sm:$0xff] %v547
    %552 = vst [vmem:[%s6 + $0x18] sm:$0xff] %v548
    %v553 = vadd.f32 %v545, %v546
    %v554 = vadd.f32 %v553, %v547
    %v555 = vadd.f32 %v554, %v548
    %v556 = vrot.slane %v555, 4
    %v557 = vadd.f32 %v555, %v556
    %v558 = vrot.slane %v557, 2
    %v559 = vadd.f32 %v557, %v558
    %v560 = vrot.slane %v559, 1
    %v561 = vadd.f32 %v559, %v560
    %v562 = vmul.f32 %v545, %v545
    %v563 = vmul.f32 %v546, %v546
    %v564 = vmul.f32 %v547, %v547
    %v565 = vmul.f32 %v548, %v548
    %v566 = vadd.f32 %v562, %v563
    %v567 = vadd.f32 %v566, %v564
    %v568 = vadd.f32 %v567, %v565
    %v569 = vrot.slane %v568, 4
    %v570 = vadd.f32 %v568, %v569
    %v571 = vrot.slane %v570, 2
    %v572 = vadd.f32 %v570, %v571
    %v573 = vrot.slane %v572, 1
    %v574 = vadd.f32 %v572, %v573
    %vm575 = vcmask 1040384
    %v576 = vsel %vm575, %v561, %v574
    %577 = vst [vmem:[%s7] sm:$0x3] %v576
    // Predicated region
    $region30: #{basic_conv_forward.4} parent=1 // pred_check
      _
    $region31: #{basic_conv_forward.4} parent=1 // pred_check_branch
      %579 = sbr.rel (0) target = $region33
    $region32: #{basic_conv_forward.4} parent=1 // pred_region
      _
    $region33: #{basic_conv_forward.4} parent=1 // pred_fallthru
      _
    // Predicated region
    $region34: #{basic_conv_forward.4} parent=1 // pred_check
      _
    $region35: #{basic_conv_forward.4} parent=1 // pred_check_branch
      %581 = sbr.rel (0) target = $region37
    $region36: #{basic_conv_forward.4} parent=1 // pred_region
      _
    $region37: #{basic_conv_forward.4} parent=1 // pred_fallthru
      _
    // Predicated region
    $region38: #{basic_conv_forward.4} parent=1 // pred_check
      _
    $region39: #{basic_conv_forward.4} parent=1 // pred_check_branch
      %583 = sbr.rel (0) target = $region41
    $region40: #{basic_conv_forward.4} parent=1 // pred_region
      _
    $region41: #{basic_conv_forward.4} parent=1 // pred_fallthru
      _
    // Predicated region
    $region42: #{basic_conv_forward.4} parent=1 // pred_check
      _
    $region43: #{basic_conv_forward.4} parent=1 // pred_check_branch
      %585 = sbr.rel (0) target = $region45
    $region44: #{basic_conv_forward.4} parent=1 // pred_region
      _
    $region45: #{basic_conv_forward.4} parent=1 // pred_fallthru
      _
    %586 = vsyncpa [#allocation3], 1

</llo_original>
